<compile_context>
chip_gen: v5e
topology: v5e:2x2
jax: 0.10.0
libtpu: 0.0.40
codegen_flags: <defaults>
</compile_context>

<pallas_src>
import functools
import math

import jax
import jax.numpy as jnp
from jax.experimental import pallas as pl
from jax.experimental.pallas import tpu as pltpu


def _round_up(x, m):
    return (x + m - 1) // m * m


# ---------------------------------------------------------------------------
# Fused kernel: runs ALL stages for one batch tile.  Grid = (batch_tiles,).
#   x_ref  : (BT, IN_PAD)               padded network input
#   fw_ref : (S, IN_PAD, H)             per-stage first-layer weight, (in, out)
#   hw_ref : (S, num_hidden, H, H)      per-stage hidden weights, (in, out)
#   lw_ref : (S, 1, H)                  per-stage last-layer weight row
#   fb_ref : (S, 1, H)                  first-layer biases
#   hb_ref : (S, num_hidden, 1, H)      hidden biases
#   lb_ref : (S, 1, 1)                  last-layer biases
#   o_ref  : (BT, OUT_PAD)              lane-dense output, written once
# ---------------------------------------------------------------------------
def stack_mlp_kernel(x_ref, fw_ref, hw_ref, lw_ref, fb_ref, hb_ref, lb_ref,
                     o_ref, *, num_stages, num_hidden):
    BT, OUT_PAD = o_ref.shape

    ys = []
    y = None  # (BT, 1) output of the previous stage
    for s in range(num_stages):  # fully unrolled: trip count is small & static
        if s == 0:
            # (input_dim -> hidden): real matmul over the padded input block.
            # Padded rows of fw / padded lanes of x are zero.
            h = jnp.tanh(
                jnp.dot(x_ref[...], fw_ref[0],
                        preferred_element_type=jnp.float32)
                + fb_ref[0]
            )
        else:
            # (1 -> hidden): outer product of a (BT, 1) scalar with weight row
            # 0 -> pure VPU broadcast multiply, no MXU round-trip.
            fw_row = fw_ref[s][0:1, :]                       # (1, H)
            h = jnp.tanh(y * fw_row + fb_ref[s])

        # Hidden layers — short fixed trip count, fully unrolled.
        for l in range(num_hidden):
            h = jnp.tanh(
                jnp.dot(h, hw_ref[s, l],
                        preferred_element_type=jnp.float32)
                + hb_ref[s, l]
            )

        # Last layer (hidden -> 1): VPU multiply + lane reduction, no matmul.
        y = jnp.sum(h * lw_ref[s], axis=-1, keepdims=True) + lb_ref[s]
        ys.append(y)

    # Assemble the lane-dense output in registers and store it exactly once.
    col = jax.lax.broadcasted_iota(jnp.int32, (BT, OUT_PAD), 1)
    out = jnp.zeros((BT, OUT_PAD), jnp.float32)
    for s, ys_s in enumerate(ys):
        out = jnp.where(col == s, ys_s, out)
    o_ref[...] = out


# ---------------------------------------------------------------------------
# Parameter construction (mirrors MLP.reset_parameters: xavier_normal_
# weights, zero biases).  Returns packed arrays for the fused kernel and the
# raw per-layer params for the pure-JAX reference.
# ---------------------------------------------------------------------------
def xavier_normal(key, out_dim, in_dim):
    std = math.sqrt(2.0 / (in_dim + out_dim))
    return std * jax.random.normal(key, (out_dim, in_dim), dtype=jnp.float32)


def make_stack_mlp_params(key, input_dim, output_dim, hidden_dim, num_hidden):
    assert num_hidden >= 1, "this packing assumes at least one hidden layer"
    S, H = output_dim, hidden_dim
    L = num_hidden + 2
    IN_PAD = _round_up(max(input_dim, 1), 8)

    fw = jnp.zeros((S, IN_PAD, H), jnp.float32)
    hw = jnp.zeros((S, num_hidden, H, H), jnp.float32)
    lw = jnp.zeros((S, 1, H), jnp.float32)
    fb = jnp.zeros((S, 1, H), jnp.float32)          # zeros (reset_parameters)
    hb = jnp.zeros((S, num_hidden, 1, H), jnp.float32)
    lb = jnp.zeros((S, 1, 1), jnp.float32)

    raw = []
    stage_keys = jax.random.split(key, S)
    for s in range(S):
        din = input_dim if s == 0 else 1
        dims = [(din, H)] + [(H, H)] * num_hidden + [(H, 1)]
        lkeys = jax.random.split(stage_keys[s], L)
        layers = []
        for l, (d_in, d_out) in enumerate(dims):
            W = xavier_normal(lkeys[l], d_out, d_in)  # PyTorch (out, in)
            b = jnp.zeros((d_out,), jnp.float32)
            layers.append((W, b))
            if l == 0:
                fw = fw.at[s, :d_in, :].set(W.T)      # store as (in, out)
            elif l == L - 1:
                lw = lw.at[s, 0, :].set(W[0])         # (1, H) row
            else:
                hw = hw.at[s, l - 1].set(W.T)
        raw.append(layers)
    return (fw, hw, lw, fb, hb, lb), raw


# ---------------------------------------------------------------------------
# StackMLP forward: one fused pallas_call over batch tiles only.
# ---------------------------------------------------------------------------
def stack_mlp_forward(x, packed, *, output_dim, hidden_dim, num_hidden):
    fw, hw, lw, fb, hb, lb = packed
    B_in = x.shape[0]
    S, H = output_dim, hidden_dim
    IN_PAD = fw.shape[1]
    OUT_PAD = _round_up(max(output_dim, 1), 128)

    # Batch tiling: pad internally (no caller-facing batch asserts).  Cap BT
    # at 128 so the batch-parallel axis yields >= 2 tiles (both v7x TCs) as
    # soon as B >= 256.
    BT = 128 if B_in >= 128 else _round_up(max(B_in, 1), 8)
    B = _round_up(B_in, BT)
    NB = B // BT

    x_pad = jnp.zeros((B, IN_PAD), jnp.float32).at[:B_in, : x.shape[1]].set(
        x.astype(jnp.float32)
    )

    # VMEM guard: all weights are kept resident; inputs/outputs are
    # double-buffered by the pipeline.
    weight_bytes = 4 * (fw.size + hw.size + lw.size + fb.size + hb.size
                        + lb.size)
    block_bytes = 4 * (BT * IN_PAD + BT * OUT_PAD)
    vmem_est = 2 * (weight_bytes + block_bytes)
    # TODO(synk): for large hidden_dim/num_hidden the resident-weight design
    # should fall back to streaming hw per stage/layer (grid axis or
    # make_async_copy); not needed at these sizes.
    assert vmem_est < 24 * 1024 * 1024, (
        f"resident weights too large for this fused kernel ({vmem_est} B)"
    )

    flops = 2 * B * (IN_PAD * H + (S - 1) * H + S * num_hidden * H * H + S * H)
    transcendentals = B * S * H * (num_hidden + 1)
    bytes_accessed = 4 * (
        B * IN_PAD + fw.size + hw.size + lw.size + fb.size + hb.size + lb.size
        + B * OUT_PAD
    )

    y_pad = pl.pallas_call(
        functools.partial(stack_mlp_kernel, num_stages=S,
                          num_hidden=num_hidden),
        out_shape=jax.ShapeDtypeStruct((B, OUT_PAD), jnp.float32),
        grid_spec=pltpu.PrefetchScalarGridSpec(
            num_scalar_prefetch=0,
            grid=(NB,),
            in_specs=[
                pl.BlockSpec((BT, IN_PAD), lambda b: (b, 0)),
                # All weights: full-S blocks, index_map ignores the grid index
                # -> fetched once, VMEM-resident across batch tiles.
                pl.BlockSpec((S, IN_PAD, H), lambda b: (0, 0, 0)),
                pl.BlockSpec((S, num_hidden, H, H), lambda b: (0, 0, 0, 0)),
                pl.BlockSpec((S, 1, H), lambda b: (0, 0, 0)),
                pl.BlockSpec((S, 1, H), lambda b: (0, 0, 0)),
                pl.BlockSpec((S, num_hidden, 1, H), lambda b: (0, 0, 0, 0)),
                pl.BlockSpec((S, 1, 1), lambda b: (0, 0, 0)),
            ],
            out_specs=pl.BlockSpec((BT, OUT_PAD), lambda b: (b, 0)),
        ),
        compiler_params=pltpu.CompilerParams(
            dimension_semantics=("parallel",),
            vmem_limit_bytes=32 * 1024 * 1024,
        ),
        cost_estimate=pl.CostEstimate(
            flops=flops,
            transcendentals=transcendentals,
            bytes_accessed=bytes_accessed,
        ),
    )(x_pad, fw, hw, lw, fb, hb, lb)

    return y_pad[:B_in, :output_dim]


# Pure-JAX reference (mirrors the PyTorch forward exactly).
def ref_stack_mlp(x, raw_params):
    outs = []
    cur = x.astype(jnp.float32)
    for layers in raw_params:
        h = cur
        for (W, b) in layers[:-1]:
            h = jnp.tanh(h @ W.T + b)
        W, b = layers[-1]
        cur = h @ W.T + b
        outs.append(cur)
    return jnp.concatenate(outs, axis=1)


if __name__ == "__main__":
    input_dim, output_dim, hidden_dim, num_hidden = 4, 3, 32, 2
    batch = 8

    key = jax.random.PRNGKey(0)
    kx, kp = jax.random.split(key)
    x = jax.random.normal(kx, (batch, input_dim), dtype=jnp.float32)

    packed, raw = make_stack_mlp_params(
        kp, input_dim, output_dim, hidden_dim, num_hidden
    )

    y = stack_mlp_forward(
        x, packed,
        output_dim=output_dim, hidden_dim=hidden_dim, num_hidden=num_hidden,
    )
    y = jax.block_until_ready(y)

    y_ref = ref_stack_mlp(x, raw)
    assert y.shape == (batch, output_dim), y.shape
    assert jnp.allclose(y, y_ref, atol=1e-3, rtol=1e-3), (
        float(jnp.max(jnp.abs(y - y_ref)))
    )

    print("KERNEL_OK")
</pallas_src>

<mosaic_0001>
module attributes {stable_mosaic.version = 11 : i64} {
  func.func @stack_mlp_kernel(%arg0: i32, %arg1: memref<8x8xf32, #tpu.memory_space<vmem>>, %arg2: memref<3x8x32xf32, #tpu.memory_space<vmem>>, %arg3: memref<3x2x32x32xf32, #tpu.memory_space<vmem>>, %arg4: memref<3x1x32xf32, #tpu.memory_space<vmem>>, %arg5: memref<3x1x32xf32, #tpu.memory_space<vmem>>, %arg6: memref<3x2x1x32xf32, #tpu.memory_space<vmem>>, %arg7: memref<3x1x1xf32, #tpu.memory_space<vmem>>, %arg8: memref<8x128xf32, #tpu.memory_space<vmem>>) attributes {dimension_semantics = [#tpu.dimension_semantics<parallel>], iteration_bounds = array<i64: 1>, scalar_prefetch = 0 : i64, scratch_operands = 0 : i64, tpu.core_type = #tpu.core_type<tc>, window_params = [{transform_indices = @transform_0, window_bounds = array<i64: 8, 8>}, {pipeline_mode = #tpu.pipeline_mode<synchronous>, transform_indices = @transform_1, window_bounds = array<i64: 3, 8, 32>}, {pipeline_mode = #tpu.pipeline_mode<synchronous>, transform_indices = @transform_2, window_bounds = array<i64: 3, 2, 32, 32>}, {pipeline_mode = #tpu.pipeline_mode<synchronous>, transform_indices = @transform_3, window_bounds = array<i64: 3, 1, 32>}, {pipeline_mode = #tpu.pipeline_mode<synchronous>, transform_indices = @transform_4, window_bounds = array<i64: 3, 1, 32>}, {pipeline_mode = #tpu.pipeline_mode<synchronous>, transform_indices = @transform_5, window_bounds = array<i64: 3, 2, 1, 32>}, {pipeline_mode = #tpu.pipeline_mode<synchronous>, transform_indices = @transform_6, window_bounds = array<i64: 3, 1, 1>}, {transform_indices = @transform_7, window_bounds = array<i64: 8, 128>}]} {
    %c0 = arith.constant 0 : index
    %c0_0 = arith.constant 0 : index
    %0 = vector.load %arg1[%c0, %c0_0] : memref<8x8xf32, #tpu.memory_space<vmem>>, vector<8x8xf32>
    %c0_1 = arith.constant 0 : index
    %c0_2 = arith.constant 0 : index
    %c0_3 = arith.constant 0 : index
    %1 = vector.load %arg2[%c0_1, %c0_2, %c0_3] : memref<3x8x32xf32, #tpu.memory_space<vmem>>, vector<1x8x32xf32>
    %2 = vector.shape_cast %1 : vector<1x8x32xf32> to vector<8x32xf32>
    %cst = arith.constant dense<0.000000e+00> : vector<8x32xf32>
    %3 = tpu.matmul %0, %2, %cst {dimension_numbers = #tpu.dot_dimension_numbers<[1], [0], [0], [1], [0, 0, 1, 1], [], []>} : vector<8x8xf32>, vector<8x32xf32>, vector<8x32xf32> -> vector<8x32xf32>
    %c0_4 = arith.constant 0 : index
    %c0_5 = arith.constant 0 : index
    %c0_6 = arith.constant 0 : index
    %4 = vector.load %arg5[%c0_4, %c0_5, %c0_6] : memref<3x1x32xf32, #tpu.memory_space<vmem>>, vector<1x1x32xf32>
    %5 = vector.shape_cast %4 : vector<1x1x32xf32> to vector<1x32xf32>
    %6 = vector.broadcast %5 : vector<1x32xf32> to vector<8x32xf32>
    %7 = arith.addf %3, %6 : vector<8x32xf32>
    %8 = math.tanh %7 : vector<8x32xf32>
    %c0_7 = arith.constant 0 : index
    %c0_8 = arith.constant 0 : index
    %c0_9 = arith.constant 0 : index
    %c0_10 = arith.constant 0 : index
    %9 = vector.load %arg3[%c0_7, %c0_8, %c0_9, %c0_10] : memref<3x2x32x32xf32, #tpu.memory_space<vmem>>, vector<1x1x32x32xf32>
    %10 = vector.shape_cast %9 : vector<1x1x32x32xf32> to vector<32x32xf32>
    %cst_11 = arith.constant dense<0.000000e+00> : vector<8x32xf32>
    %11 = tpu.matmul %8, %10, %cst_11 {dimension_numbers = #tpu.dot_dimension_numbers<[1], [0], [0], [1], [0, 0, 1, 1], [], []>} : vector<8x32xf32>, vector<32x32xf32>, vector<8x32xf32> -> vector<8x32xf32>
    %c0_12 = arith.constant 0 : index
    %c0_13 = arith.constant 0 : index
    %c0_14 = arith.constant 0 : index
    %c0_15 = arith.constant 0 : index
    %12 = vector.load %arg6[%c0_12, %c0_13, %c0_14, %c0_15] : memref<3x2x1x32xf32, #tpu.memory_space<vmem>>, vector<1x1x1x32xf32>
    %13 = vector.shape_cast %12 : vector<1x1x1x32xf32> to vector<1x32xf32>
    %14 = vector.broadcast %13 : vector<1x32xf32> to vector<8x32xf32>
    %15 = arith.addf %11, %14 : vector<8x32xf32>
    %16 = math.tanh %15 : vector<8x32xf32>
    %c0_16 = arith.constant 0 : index
    %c1 = arith.constant 1 : index
    %c0_17 = arith.constant 0 : index
    %c0_18 = arith.constant 0 : index
    %17 = vector.load %arg3[%c0_16, %c1, %c0_17, %c0_18] : memref<3x2x32x32xf32, #tpu.memory_space<vmem>>, vector<1x1x32x32xf32>
    %18 = vector.shape_cast %17 : vector<1x1x32x32xf32> to vector<32x32xf32>
    %cst_19 = arith.constant dense<0.000000e+00> : vector<8x32xf32>
    %19 = tpu.matmul %16, %18, %cst_19 {dimension_numbers = #tpu.dot_dimension_numbers<[1], [0], [0], [1], [0, 0, 1, 1], [], []>} : vector<8x32xf32>, vector<32x32xf32>, vector<8x32xf32> -> vector<8x32xf32>
    %c0_20 = arith.constant 0 : index
    %c1_21 = arith.constant 1 : index
    %c0_22 = arith.constant 0 : index
    %c0_23 = arith.constant 0 : index
    %20 = vector.load %arg6[%c0_20, %c1_21, %c0_22, %c0_23] : memref<3x2x1x32xf32, #tpu.memory_space<vmem>>, vector<1x1x1x32xf32>
    %21 = vector.shape_cast %20 : vector<1x1x1x32xf32> to vector<1x32xf32>
    %22 = vector.broadcast %21 : vector<1x32xf32> to vector<8x32xf32>
    %23 = arith.addf %19, %22 : vector<8x32xf32>
    %24 = math.tanh %23 : vector<8x32xf32>
    %c0_24 = arith.constant 0 : index
    %c0_25 = arith.constant 0 : index
    %c0_26 = arith.constant 0 : index
    %25 = vector.load %arg4[%c0_24, %c0_25, %c0_26] : memref<3x1x32xf32, #tpu.memory_space<vmem>>, vector<1x1x32xf32>
    %26 = vector.shape_cast %25 : vector<1x1x32xf32> to vector<1x32xf32>
    %27 = vector.broadcast %26 : vector<1x32xf32> to vector<8x32xf32>
    %28 = arith.mulf %24, %27 : vector<8x32xf32>
    %cst_27 = arith.constant dense<0.000000e+00> : vector<8xf32>
    %29 = vector.multi_reduction <add>, %28, %cst_27 [1] : vector<8x32xf32> to vector<8xf32>
    %30 = vector.shape_cast %29 : vector<8xf32> to vector<8x1xf32>
    %c0_28 = arith.constant 0 : index
    %c0_29 = arith.constant 0 : index
    %c0_30 = arith.constant 0 : index
    %31 = vector.load %arg7[%c0_28, %c0_29, %c0_30] : memref<3x1x1xf32, #tpu.memory_space<vmem>>, vector<1x1x1xf32>
    %32 = vector.shape_cast %31 : vector<1x1x1xf32> to vector<1x1xf32>
    %33 = vector.broadcast %32 : vector<1x1xf32> to vector<8x1xf32>
    %34 = arith.addf %30, %33 : vector<8x1xf32>
    %c1_31 = arith.constant 1 : index
    %c0_32 = arith.constant 0 : index
    %c0_33 = arith.constant 0 : index
    %35 = vector.load %arg2[%c1_31, %c0_32, %c0_33] : memref<3x8x32xf32, #tpu.memory_space<vmem>>, vector<1x8x32xf32>
    %36 = vector.shape_cast %35 : vector<1x8x32xf32> to vector<8x32xf32>
    %37 = vector.extract_strided_slice %36 {offsets = [0, 0], sizes = [1, 32], strides = [1, 1]} : vector<8x32xf32> to vector<1x32xf32>
    %38 = vector.broadcast %34 : vector<8x1xf32> to vector<8x32xf32>
    %39 = vector.broadcast %37 : vector<1x32xf32> to vector<8x32xf32>
    %40 = arith.mulf %38, %39 : vector<8x32xf32>
    %c1_34 = arith.constant 1 : index
    %c0_35 = arith.constant 0 : index
    %c0_36 = arith.constant 0 : index
    %41 = vector.load %arg5[%c1_34, %c0_35, %c0_36] : memref<3x1x32xf32, #tpu.memory_space<vmem>>, vector<1x1x32xf32>
    %42 = vector.shape_cast %41 : vector<1x1x32xf32> to vector<1x32xf32>
    %43 = vector.broadcast %42 : vector<1x32xf32> to vector<8x32xf32>
    %44 = arith.addf %40, %43 : vector<8x32xf32>
    %45 = math.tanh %44 : vector<8x32xf32>
    %c1_37 = arith.constant 1 : index
    %c0_38 = arith.constant 0 : index
    %c0_39 = arith.constant 0 : index
    %c0_40 = arith.constant 0 : index
    %46 = vector.load %arg3[%c1_37, %c0_38, %c0_39, %c0_40] : memref<3x2x32x32xf32, #tpu.memory_space<vmem>>, vector<1x1x32x32xf32>
    %47 = vector.shape_cast %46 : vector<1x1x32x32xf32> to vector<32x32xf32>
    %cst_41 = arith.constant dense<0.000000e+00> : vector<8x32xf32>
    %48 = tpu.matmul %45, %47, %cst_41 {dimension_numbers = #tpu.dot_dimension_numbers<[1], [0], [0], [1], [0, 0, 1, 1], [], []>} : vector<8x32xf32>, vector<32x32xf32>, vector<8x32xf32> -> vector<8x32xf32>
    %c1_42 = arith.constant 1 : index
    %c0_43 = arith.constant 0 : index
    %c0_44 = arith.constant 0 : index
    %c0_45 = arith.constant 0 : index
    %49 = vector.load %arg6[%c1_42, %c0_43, %c0_44, %c0_45] : memref<3x2x1x32xf32, #tpu.memory_space<vmem>>, vector<1x1x1x32xf32>
    %50 = vector.shape_cast %49 : vector<1x1x1x32xf32> to vector<1x32xf32>
    %51 = vector.broadcast %50 : vector<1x32xf32> to vector<8x32xf32>
    %52 = arith.addf %48, %51 : vector<8x32xf32>
    %53 = math.tanh %52 : vector<8x32xf32>
    %c1_46 = arith.constant 1 : index
    %c1_47 = arith.constant 1 : index
    %c0_48 = arith.constant 0 : index
    %c0_49 = arith.constant 0 : index
    %54 = vector.load %arg3[%c1_46, %c1_47, %c0_48, %c0_49] : memref<3x2x32x32xf32, #tpu.memory_space<vmem>>, vector<1x1x32x32xf32>
    %55 = vector.shape_cast %54 : vector<1x1x32x32xf32> to vector<32x32xf32>
    %cst_50 = arith.constant dense<0.000000e+00> : vector<8x32xf32>
    %56 = tpu.matmul %53, %55, %cst_50 {dimension_numbers = #tpu.dot_dimension_numbers<[1], [0], [0], [1], [0, 0, 1, 1], [], []>} : vector<8x32xf32>, vector<32x32xf32>, vector<8x32xf32> -> vector<8x32xf32>
    %c1_51 = arith.constant 1 : index
    %c1_52 = arith.constant 1 : index
    %c0_53 = arith.constant 0 : index
    %c0_54 = arith.constant 0 : index
    %57 = vector.load %arg6[%c1_51, %c1_52, %c0_53, %c0_54] : memref<3x2x1x32xf32, #tpu.memory_space<vmem>>, vector<1x1x1x32xf32>
    %58 = vector.shape_cast %57 : vector<1x1x1x32xf32> to vector<1x32xf32>
    %59 = vector.broadcast %58 : vector<1x32xf32> to vector<8x32xf32>
    %60 = arith.addf %56, %59 : vector<8x32xf32>
    %61 = math.tanh %60 : vector<8x32xf32>
    %c1_55 = arith.constant 1 : index
    %c0_56 = arith.constant 0 : index
    %c0_57 = arith.constant 0 : index
    %62 = vector.load %arg4[%c1_55, %c0_56, %c0_57] : memref<3x1x32xf32, #tpu.memory_space<vmem>>, vector<1x1x32xf32>
    %63 = vector.shape_cast %62 : vector<1x1x32xf32> to vector<1x32xf32>
    %64 = vector.broadcast %63 : vector<1x32xf32> to vector<8x32xf32>
    %65 = arith.mulf %61, %64 : vector<8x32xf32>
    %cst_58 = arith.constant dense<0.000000e+00> : vector<8xf32>
    %66 = vector.multi_reduction <add>, %65, %cst_58 [1] : vector<8x32xf32> to vector<8xf32>
    %67 = vector.shape_cast %66 : vector<8xf32> to vector<8x1xf32>
    %c1_59 = arith.constant 1 : index
    %c0_60 = arith.constant 0 : index
    %c0_61 = arith.constant 0 : index
    %68 = vector.load %arg7[%c1_59, %c0_60, %c0_61] : memref<3x1x1xf32, #tpu.memory_space<vmem>>, vector<1x1x1xf32>
    %69 = vector.shape_cast %68 : vector<1x1x1xf32> to vector<1x1xf32>
    %70 = vector.broadcast %69 : vector<1x1xf32> to vector<8x1xf32>
    %71 = arith.addf %67, %70 : vector<8x1xf32>
    %c2 = arith.constant 2 : index
    %c0_62 = arith.constant 0 : index
    %c0_63 = arith.constant 0 : index
    %72 = vector.load %arg2[%c2, %c0_62, %c0_63] : memref<3x8x32xf32, #tpu.memory_space<vmem>>, vector<1x8x32xf32>
    %73 = vector.shape_cast %72 : vector<1x8x32xf32> to vector<8x32xf32>
    %74 = vector.extract_strided_slice %73 {offsets = [0, 0], sizes = [1, 32], strides = [1, 1]} : vector<8x32xf32> to vector<1x32xf32>
    %75 = vector.broadcast %71 : vector<8x1xf32> to vector<8x32xf32>
    %76 = vector.broadcast %74 : vector<1x32xf32> to vector<8x32xf32>
    %77 = arith.mulf %75, %76 : vector<8x32xf32>
    %c2_64 = arith.constant 2 : index
    %c0_65 = arith.constant 0 : index
    %c0_66 = arith.constant 0 : index
    %78 = vector.load %arg5[%c2_64, %c0_65, %c0_66] : memref<3x1x32xf32, #tpu.memory_space<vmem>>, vector<1x1x32xf32>
    %79 = vector.shape_cast %78 : vector<1x1x32xf32> to vector<1x32xf32>
    %80 = vector.broadcast %79 : vector<1x32xf32> to vector<8x32xf32>
    %81 = arith.addf %77, %80 : vector<8x32xf32>
    %82 = math.tanh %81 : vector<8x32xf32>
    %c2_67 = arith.constant 2 : index
    %c0_68 = arith.constant 0 : index
    %c0_69 = arith.constant 0 : index
    %c0_70 = arith.constant 0 : index
    %83 = vector.load %arg3[%c2_67, %c0_68, %c0_69, %c0_70] : memref<3x2x32x32xf32, #tpu.memory_space<vmem>>, vector<1x1x32x32xf32>
    %84 = vector.shape_cast %83 : vector<1x1x32x32xf32> to vector<32x32xf32>
    %cst_71 = arith.constant dense<0.000000e+00> : vector<8x32xf32>
    %85 = tpu.matmul %82, %84, %cst_71 {dimension_numbers = #tpu.dot_dimension_numbers<[1], [0], [0], [1], [0, 0, 1, 1], [], []>} : vector<8x32xf32>, vector<32x32xf32>, vector<8x32xf32> -> vector<8x32xf32>
    %c2_72 = arith.constant 2 : index
    %c0_73 = arith.constant 0 : index
    %c0_74 = arith.constant 0 : index
    %c0_75 = arith.constant 0 : index
    %86 = vector.load %arg6[%c2_72, %c0_73, %c0_74, %c0_75] : memref<3x2x1x32xf32, #tpu.memory_space<vmem>>, vector<1x1x1x32xf32>
    %87 = vector.shape_cast %86 : vector<1x1x1x32xf32> to vector<1x32xf32>
    %88 = vector.broadcast %87 : vector<1x32xf32> to vector<8x32xf32>
    %89 = arith.addf %85, %88 : vector<8x32xf32>
    %90 = math.tanh %89 : vector<8x32xf32>
    %c2_76 = arith.constant 2 : index
    %c1_77 = arith.constant 1 : index
    %c0_78 = arith.constant 0 : index
    %c0_79 = arith.constant 0 : index
    %91 = vector.load %arg3[%c2_76, %c1_77, %c0_78, %c0_79] : memref<3x2x32x32xf32, #tpu.memory_space<vmem>>, vector<1x1x32x32xf32>
    %92 = vector.shape_cast %91 : vector<1x1x32x32xf32> to vector<32x32xf32>
    %cst_80 = arith.constant dense<0.000000e+00> : vector<8x32xf32>
    %93 = tpu.matmul %90, %92, %cst_80 {dimension_numbers = #tpu.dot_dimension_numbers<[1], [0], [0], [1], [0, 0, 1, 1], [], []>} : vector<8x32xf32>, vector<32x32xf32>, vector<8x32xf32> -> vector<8x32xf32>
    %c2_81 = arith.constant 2 : index
    %c1_82 = arith.constant 1 : index
    %c0_83 = arith.constant 0 : index
    %c0_84 = arith.constant 0 : index
    %94 = vector.load %arg6[%c2_81, %c1_82, %c0_83, %c0_84] : memref<3x2x1x32xf32, #tpu.memory_space<vmem>>, vector<1x1x1x32xf32>
    %95 = vector.shape_cast %94 : vector<1x1x1x32xf32> to vector<1x32xf32>
    %96 = vector.broadcast %95 : vector<1x32xf32> to vector<8x32xf32>
    %97 = arith.addf %93, %96 : vector<8x32xf32>
    %98 = math.tanh %97 : vector<8x32xf32>
    %c2_85 = arith.constant 2 : index
    %c0_86 = arith.constant 0 : index
    %c0_87 = arith.constant 0 : index
    %99 = vector.load %arg4[%c2_85, %c0_86, %c0_87] : memref<3x1x32xf32, #tpu.memory_space<vmem>>, vector<1x1x32xf32>
    %100 = vector.shape_cast %99 : vector<1x1x32xf32> to vector<1x32xf32>
    %101 = vector.broadcast %100 : vector<1x32xf32> to vector<8x32xf32>
    %102 = arith.mulf %98, %101 : vector<8x32xf32>
    %cst_88 = arith.constant dense<0.000000e+00> : vector<8xf32>
    %103 = vector.multi_reduction <add>, %102, %cst_88 [1] : vector<8x32xf32> to vector<8xf32>
    %104 = vector.shape_cast %103 : vector<8xf32> to vector<8x1xf32>
    %c2_89 = arith.constant 2 : index
    %c0_90 = arith.constant 0 : index
    %c0_91 = arith.constant 0 : index
    %105 = vector.load %arg7[%c2_89, %c0_90, %c0_91] : memref<3x1x1xf32, #tpu.memory_space<vmem>>, vector<1x1x1xf32>
    %106 = vector.shape_cast %105 : vector<1x1x1xf32> to vector<1x1xf32>
    %107 = vector.broadcast %106 : vector<1x1xf32> to vector<8x1xf32>
    %108 = arith.addf %104, %107 : vector<8x1xf32>
    %109 = tpu.iota {dimensions = array<i32: 1>} : vector<8x128xi32>
    %cst_92 = arith.constant 0.000000e+00 : f32
    %110 = vector.broadcast %cst_92 : f32 to vector<8x128xf32>
    %c0_i32 = arith.constant 0 : i32
    %111 = vector.broadcast %c0_i32 : i32 to vector<8x128xi32>
    %112 = arith.cmpi eq, %109, %111 : vector<8x128xi32>
    %113 = vector.shape_cast %34 : vector<8x1xf32> to vector<8x1xf32>
    %114 = vector.broadcast %113 : vector<8x1xf32> to vector<8x128xf32>
    %115 = arith.select %112, %114, %110 : vector<8x128xi1>, vector<8x128xf32>
    %c1_i32 = arith.constant 1 : i32
    %116 = vector.broadcast %c1_i32 : i32 to vector<8x128xi32>
    %117 = arith.cmpi eq, %109, %116 : vector<8x128xi32>
    %118 = vector.shape_cast %71 : vector<8x1xf32> to vector<8x1xf32>
    %119 = vector.broadcast %118 : vector<8x1xf32> to vector<8x128xf32>
    %120 = arith.select %117, %119, %115 : vector<8x128xi1>, vector<8x128xf32>
    %c2_i32 = arith.constant 2 : i32
    %121 = vector.broadcast %c2_i32 : i32 to vector<8x128xi32>
    %122 = arith.cmpi eq, %109, %121 : vector<8x128xi32>
    %123 = vector.shape_cast %108 : vector<8x1xf32> to vector<8x1xf32>
    %124 = vector.broadcast %123 : vector<8x1xf32> to vector<8x128xf32>
    %125 = arith.select %122, %124, %120 : vector<8x128xi1>, vector<8x128xf32>
    %c0_93 = arith.constant 0 : index
    %c0_94 = arith.constant 0 : index
    %126 = vector.load %arg8[%c0_93, %c0_94] : memref<8x128xf32, #tpu.memory_space<vmem>>, vector<8x128xf32>
    tpu.vector_store %arg8[%c0_93, %c0_94], %125 {strides = array<i32>} : memref<8x128xf32, #tpu.memory_space<vmem>>, vector<8x128xf32>,
    return
  }
  func.func @transform_0(%arg0: i32) -> (i32, i32) {
    %c0_i32 = arith.constant 0 : i32
    %c0_i32_0 = arith.constant 0 : i32
    return %arg0, %c0_i32 : i32, i32
  }
  func.func @transform_1(%arg0: i32) -> (i32, i32, i32) {
    %c0_i32 = arith.constant 0 : i32
    %c0_i32_0 = arith.constant 0 : i32
    %c0_i32_1 = arith.constant 0 : i32
    %c0_i32_2 = arith.constant 0 : i32
    return %c0_i32, %c0_i32_0, %c0_i32_1 : i32, i32, i32
  }
  func.func @transform_2(%arg0: i32) -> (i32, i32, i32, i32) {
    %c0_i32 = arith.constant 0 : i32
    %c0_i32_0 = arith.constant 0 : i32
    %c0_i32_1 = arith.constant 0 : i32
    %c0_i32_2 = arith.constant 0 : i32
    %c0_i32_3 = arith.constant 0 : i32
    return %c0_i32, %c0_i32_0, %c0_i32_1, %c0_i32_2 : i32, i32, i32, i32
  }
  func.func @transform_3(%arg0: i32) -> (i32, i32, i32) {
    %c0_i32 = arith.constant 0 : i32
    %c0_i32_0 = arith.constant 0 : i32
    %c0_i32_1 = arith.constant 0 : i32
    %c0_i32_2 = arith.constant 0 : i32
    return %c0_i32, %c0_i32_0, %c0_i32_1 : i32, i32, i32
  }
  func.func @transform_4(%arg0: i32) -> (i32, i32, i32) {
    %c0_i32 = arith.constant 0 : i32
    %c0_i32_0 = arith.constant 0 : i32
    %c0_i32_1 = arith.constant 0 : i32
    %c0_i32_2 = arith.constant 0 : i32
    return %c0_i32, %c0_i32_0, %c0_i32_1 : i32, i32, i32
  }
  func.func @transform_5(%arg0: i32) -> (i32, i32, i32, i32) {
    %c0_i32 = arith.constant 0 : i32
    %c0_i32_0 = arith.constant 0 : i32
    %c0_i32_1 = arith.constant 0 : i32
    %c0_i32_2 = arith.constant 0 : i32
    %c0_i32_3 = arith.constant 0 : i32
    return %c0_i32, %c0_i32_0, %c0_i32_1, %c0_i32_2 : i32, i32, i32, i32
  }
  func.func @transform_6(%arg0: i32) -> (i32, i32, i32) {
    %c0_i32 = arith.constant 0 : i32
    %c0_i32_0 = arith.constant 0 : i32
    %c0_i32_1 = arith.constant 0 : i32
    %c0_i32_2 = arith.constant 0 : i32
    return %c0_i32, %c0_i32_0, %c0_i32_1 : i32, i32, i32
  }
  func.func @transform_7(%arg0: i32) -> (i32, i32) {
    %c0_i32 = arith.constant 0 : i32
    %c0_i32_0 = arith.constant 0 : i32
    return %arg0, %c0_i32 : i32, i32
  }
}

</mosaic_0001>

<llo_original>
// kernel: tpu_custom_call.1
$region0: #{tpu_custom_call.1}
  #allocation0 [shape = 'u32[]', space=smem, size = 0x4, offset = 0x4, fixed_abs, tag = 'smem constant byte address 0x4 - core index']
  #allocation1 [shape = 'u32[72,128]{1,0:T(1,128)}', space=vmem, size = 0x9000, scoped, tag = 'internal scratch']
  %s0 = inlined_call_operand.hbm [shape: f32[8,8], index: 0, kind: input, shape index: {}]
  %s1 = inlined_call_operand.hbm [shape: f32[3,8,32], index: 1, kind: input, shape index: {}]
  %s2 = inlined_call_operand.hbm [shape: f32[3,2,32,32], index: 2, kind: input, shape index: {}]
  %s3 = inlined_call_operand.hbm [shape: f32[3,1,32], index: 3, kind: input, shape index: {}]
  %s4 = inlined_call_operand.hbm [shape: f32[3,1,32], index: 4, kind: input, shape index: {}]
  %s5 = inlined_call_operand.vmem [shape: f32[3,2,1,32], index: 5, kind: input, shape index: {}]
  %s6 = inlined_call_operand.vmem [shape: f32[3,1,1], index: 6, kind: input, shape index: {}]
  %s7 = inlined_call_operand.hbm [shape: f32[8,128], index: 7, kind: output, shape index: {}]
  %s8 = sld [smem:[#allocation0]]
  $region58: #{tpu_custom_call.1} parent=0
    _
  %s10 = ssub.s32 1, %s8
  %s11 = scalar_select 0, %s10, %s8
  $region1: #{tpu_custom_call.1} parent=0
    #allocation2 [shape = 'u8[4096]{0}', space=vmem, size = 0x1000, scoped, tag = 'input window, operand 0, single buffered']
    #allocation3 [shape = 's32[1]{0}', space=sflag, size = 0x4, scoped, tag = 'scoped memory for tpu_custom_call.1']
    #allocation4 [shape = 's32[1]{0}', space=sflag, size = 0x4, scoped, tag = 'scoped memory for tpu_custom_call.1']
    #allocation5 [shape = 'u8[12288]{0}', space=vmem, size = 0x3000, scoped, tag = 'input window, operand 1, single buffered']
    #allocation6 [shape = 's32[1]{0}', space=sflag, size = 0x4, scoped, tag = 'scoped memory for tpu_custom_call.1']
    #allocation7 [shape = 'u8[98304]{0}', space=vmem, size = 0x18000, scoped, tag = 'input window, operand 2, single buffered']
    #allocation8 [shape = 'u8[1536]{0}', space=vmem, size = 0x800, scoped, tag = 'input window, operand 3, single buffered']
    #allocation9 [shape = 's32[1]{0}', space=sflag, size = 0x4, scoped, tag = 'scoped memory for tpu_custom_call.1']
    #allocation10 [shape = 'u8[1536]{0}', space=vmem, size = 0x800, scoped, tag = 'input window, operand 4, single buffered']
    #allocation11 [shape = 'u8[4096]{0}', space=vmem, size = 0x1000, scoped, tag = 'output window, operand 0, single buffered']
    %12 = vsyncpa [#allocation3], 0
    %13 = vsyncpa [#allocation6], 0
    %14 = vsyncpa [#allocation9], 0
    %15 = vsyncpa [#allocation4], 0
    // Predicated region
    $region2: #{tpu_custom_call.1} parent=1 // pred_check
      _
    $region3: #{tpu_custom_call.1} parent=1 // pred_check_branch
      %17 = sbr.rel (0) target = $region5
    $region4: #{tpu_custom_call.1} parent=1 // pred_region
      %19 = vsyncadd [#allocation3], 0
      %s21 = sshll.u32 %s0, 4
      %s22 = int_to_ptr.hbm [resolvable:$true] %s21
      %s23 = sshll.u32 [#allocation2], 4
      %s24 = int_to_ptr.vmem [resolvable:$true] %s23
      %26 = dma.hbm_to_vmem [thread:$0]  %s22, 128, %s24, [#allocation3]
    $region5: #{tpu_custom_call.1} parent=1 // pred_fallthru
      _
    // Predicated region
    $region6: #{tpu_custom_call.1} parent=1 // pred_check
      _
    $region7: #{tpu_custom_call.1} parent=1 // pred_check_branch
      %28 = sbr.rel (0) target = $region9
    $region8: #{tpu_custom_call.1} parent=1 // pred_region
      %30 = vsyncadd [#allocation6], 0
      %s31 = sshll.u32 %s1, 4
      %s32 = int_to_ptr.hbm [resolvable:$true] %s31
      %s33 = sshll.u32 [#allocation5], 4
      %s34 = int_to_ptr.vmem [resolvable:$true] %s33
      %39 = dma.hbm_to_vmem [thread:$0]  %s32, 384, %s34, [#allocation6], 128, 128, 8
    $region9: #{tpu_custom_call.1} parent=1 // pred_fallthru
      _
    // Predicated region
    $region10: #{tpu_custom_call.1} parent=1 // pred_check
      _
    $region11: #{tpu_custom_call.1} parent=1 // pred_check_branch
      %41 = sbr.rel (0) target = $region13
    $region12: #{tpu_custom_call.1} parent=1 // pred_region
      %43 = vsyncadd [#allocation6], 0
      %s44 = sshll.u32 %s2, 4
      %s45 = int_to_ptr.hbm [resolvable:$true] %s44
      %s46 = sshll.u32 [#allocation7], 4
      %s47 = int_to_ptr.vmem [resolvable:$true] %s46
      %52 = dma.hbm_to_vmem [thread:$0]  %s45, 3072, %s47, [#allocation6], 128, 128, 8
    $region13: #{tpu_custom_call.1} parent=1 // pred_fallthru
      _
    // Predicated region
    $region14: #{tpu_custom_call.1} parent=1 // pred_check
      _
    $region15: #{tpu_custom_call.1} parent=1 // pred_check_branch
      %54 = sbr.rel (0) target = $region17
    $region16: #{tpu_custom_call.1} parent=1 // pred_region
      %56 = vsyncadd [#allocation9], 0
      %s57 = sshll.u32 %s3, 4
      %s58 = int_to_ptr.hbm [resolvable:$true] %s57
      %s59 = sshll.u32 [#allocation8], 4
      %s60 = int_to_ptr.vmem [resolvable:$true] %s59
      %65 = dma.hbm_to_vmem [thread:$0]  %s58, 48, %s60, [#allocation9], 16, 16, 1
    $region17: #{tpu_custom_call.1} parent=1 // pred_fallthru
      _
    // Predicated region
    $region18: #{tpu_custom_call.1} parent=1 // pred_check
      _
    $region19: #{tpu_custom_call.1} parent=1 // pred_check_branch
      %67 = sbr.rel (0) target = $region21
    $region20: #{tpu_custom_call.1} parent=1 // pred_region
      %69 = vsyncadd [#allocation9], 0
      %s70 = sshll.u32 %s4, 4
      %s71 = int_to_ptr.hbm [resolvable:$true] %s70
      %s72 = sshll.u32 [#allocation10], 4
      %s73 = int_to_ptr.vmem [resolvable:$true] %s72
      %78 = dma.hbm_to_vmem [thread:$0]  %s71, 48, %s73, [#allocation9], 16, 16, 1
    $region21: #{tpu_custom_call.1} parent=1 // pred_fallthru
      _
    // Predicated region
    $region22: #{tpu_custom_call.1} parent=1 // pred_check
      _
    $region23: #{tpu_custom_call.1} parent=1 // pred_check_branch
      %80 = sbr.rel (0) target = $region25
    $region24: #{tpu_custom_call.1} parent=1 // pred_region
      _
    $region25: #{tpu_custom_call.1} parent=1 // pred_fallthru
      _
    // Predicated region
    $region26: #{tpu_custom_call.1} parent=1 // pred_check
      _
    $region27: #{tpu_custom_call.1} parent=1 // pred_check_branch
      %82 = sbr.rel (0) target = $region29
    $region28: #{tpu_custom_call.1} parent=1 // pred_region
      _
    $region29: #{tpu_custom_call.1} parent=1 // pred_fallthru
      _
    // Predicated region
    $region30: #{tpu_custom_call.1} parent=1 // pred_check
      _
    $region31: #{tpu_custom_call.1} parent=1 // pred_check_branch
      %84 = sbr.rel (0) target = $region33
    $region32: #{tpu_custom_call.1} parent=1 // pred_region
      %86 = dma.done [#allocation3], 128
    $region33: #{tpu_custom_call.1} parent=1 // pred_fallthru
      _
    // Predicated region
    $region34: #{tpu_custom_call.1} parent=1 // pred_check
      _
    $region35: #{tpu_custom_call.1} parent=1 // pred_check_branch
      %88 = sbr.rel (0) target = $region37
    $region36: #{tpu_custom_call.1} parent=1 // pred_region
      %90 = dma.done [#allocation6], 384
    $region37: #{tpu_custom_call.1} parent=1 // pred_fallthru
      _
    // Predicated region
    $region38: #{tpu_custom_call.1} parent=1 // pred_check
      _
    $region39: #{tpu_custom_call.1} parent=1 // pred_check_branch
      %92 = sbr.rel (0) target = $region41
    $region40: #{tpu_custom_call.1} parent=1 // pred_region
      %94 = dma.done [#allocation6], 3072
    $region41: #{tpu_custom_call.1} parent=1 // pred_fallthru
      _
    // Predicated region
    $region42: #{tpu_custom_call.1} parent=1 // pred_check
      _
    $region43: #{tpu_custom_call.1} parent=1 // pred_check_branch
      %96 = sbr.rel (0) target = $region45
    $region44: #{tpu_custom_call.1} parent=1 // pred_region
      %98 = dma.done [#allocation9], 48
    $region45: #{tpu_custom_call.1} parent=1 // pred_fallthru
      _
    // Predicated region
    $region46: #{tpu_custom_call.1} parent=1 // pred_check
      _
    $region47: #{tpu_custom_call.1} parent=1 // pred_check_branch
      %100 = sbr.rel (0) target = $region49
    $region48: #{tpu_custom_call.1} parent=1 // pred_region
      %102 = dma.done [#allocation9], 48
    $region49: #{tpu_custom_call.1} parent=1 // pred_fallthru
      _
    %v103 = vld [vmem:[#allocation2] sm:$0xff]
    %v104 = vld [vmem:[#allocation5] sm:$0xff]
    %v105 = vld [vmem:[#allocation10] sm:$0x1]
    %v107 = vperm.slane %v105, 0
    %vm109 = vcmask 64512
    %v111 = vsel %vm109, %v103, 0
    %113 = vmatpush.msra.mxu0 0.0
    %114 = vmatpush.msra.mxu0 0.0
    %115 = vmatpush.msra.mxu0 0.0
    %116 = vmatpush.msra.mxu0 0.0
    %117 = vmatpush.msra.mxu0 0.0
    %118 = vmatpush.msra.mxu0 0.0
    %119 = vmatpush.msra.mxu0 0.0
    %120 = vmatpush.msra.mxu0 0.0
    %121 = vmatpush.msra.mxu0 0.0
    %122 = vmatpush.msra.mxu0 0.0
    %123 = vmatpush.msra.mxu0 0.0
    %124 = vmatpush.msra.mxu0 0.0
    %125 = vmatpush.msra.mxu0 0.0
    %126 = vmatpush.msra.mxu0 0.0
    %127 = vmatpush.msra.mxu0 0.0
    %128 = vmatpush.msra.mxu0 %v104
    %129 = vmatmul.f32.gmra.mxu0 %v111
    %v130 = vpop.f32.mrf.mxu0
    %v131 = vadd.f32 %v107, %v130
    %132 = vdwg.mxu0
    %v133 = vtanh.pop %v131
    %v134 = vld [vmem:[#allocation7] sm:$0xff]
    %v135 = vld [vmem:[#allocation7 + $0x8] sm:$0xff]
    %v136 = vld [vmem:[#allocation7 + $0x10] sm:$0xff]
    %v137 = vld [vmem:[#allocation7 + $0x18] sm:$0xff]
    %v138 = vld [vmem:[%s5] sm:$0x1]
    %v140 = vperm.slane %v138, 0
    %vm142 = vcmask 261120
    %v144 = vsel %vm142, %v133, 0
    %146 = vmatpush.msra.mxu0 0.0
    %147 = vmatpush.msra.mxu0 0.0
    %148 = vmatpush.msra.mxu0 0.0
    %149 = vmatpush.msra.mxu0 0.0
    %150 = vmatpush.msra.mxu0 0.0
    %151 = vmatpush.msra.mxu0 0.0
    %152 = vmatpush.msra.mxu0 0.0
    %153 = vmatpush.msra.mxu0 0.0
    %154 = vmatpush.msra.mxu0 0.0
    %155 = vmatpush.msra.mxu0 0.0
    %156 = vmatpush.msra.mxu0 0.0
    %157 = vmatpush.msra.mxu0 0.0
    %158 = vmatpush.msra.mxu0 %v137
    %159 = vmatpush.msra.mxu0 %v136
    %160 = vmatpush.msra.mxu0 %v135
    %161 = vmatpush.msra.mxu0 %v134
    %162 = vmatmul.f32.gmra.mxu0 %v144
    %v163 = vpop.f32.mrf.mxu0
    %v164 = vadd.f32 %v140, %v163
    %165 = vdwg.mxu0
    %v166 = vtanh.pop %v164
    %s167 = scalar_lea.vmem [#allocation7], 32
    %v168 = vld [vmem:[%s167] sm:$0xff]
    %v169 = vld [vmem:[%s167 + $0x8] sm:$0xff]
    %v170 = vld [vmem:[%s167 + $0x10] sm:$0xff]
    %v171 = vld [vmem:[%s167 + $0x18] sm:$0xff]
    %s172 = scalar_lea.vmem %s5, 1
    %v173 = vld [vmem:[%s172] sm:$0x1]
    %v175 = vperm.slane %v173, 0
    %v178 = vsel %vm142, %v166, 0
    %180 = vmatpush.msra.mxu0 0.0
    %181 = vmatpush.msra.mxu0 0.0
    %182 = vmatpush.msra.mxu0 0.0
    %183 = vmatpush.msra.mxu0 0.0
    %184 = vmatpush.msra.mxu0 0.0
    %185 = vmatpush.msra.mxu0 0.0
    %186 = vmatpush.msra.mxu0 0.0
    %187 = vmatpush.msra.mxu0 0.0
    %188 = vmatpush.msra.mxu0 0.0
    %189 = vmatpush.msra.mxu0 0.0
    %190 = vmatpush.msra.mxu0 0.0
    %191 = vmatpush.msra.mxu0 0.0
    %192 = vmatpush.msra.mxu0 %v171
    %193 = vmatpush.msra.mxu0 %v170
    %194 = vmatpush.msra.mxu0 %v169
    %195 = vmatpush.msra.mxu0 %v168
    %196 = vmatmul.f32.gmra.mxu0 %v178
    %v197 = vpop.f32.mrf.mxu0
    %v198 = vadd.f32 %v175, %v197
    %199 = vdwg.mxu0
    %v200 = vtanh.pop %v198
    %v201 = vld [vmem:[#allocation8] sm:$0x1]
    %v203 = vperm.slane %v201, 0
    %v205 = vmul.f32 %v200, %v203
    %v206 = vsel %vm142, %v205, 0.0
    %207 = vadd.xlane.f32.xlu0 %v206
    %v208 = vpop.xlane.xlu0 %207
    %v209 = vld [vmem:[%s6] sm:$0x1]
    %v211 = vperm.slane %v209, 0
    %v213 = vadd.f32 %v208, %v211
    %s214 = scalar_lea.vmem [#allocation5], 8
    %v215 = vld [vmem:[%s214] sm:$0xff]
    %217 = vset.pattern.permute.xlu0 0
    %218 = vperm.xlu0 %217, %v213
    %v219 = vpop.permute.xlu0 %218
    %v221 = vperm.slane %v215, 0
    %v222 = vmul.f32 %v219, %v221
    %s223 = scalar_lea.vmem [#allocation10], 1
    %v224 = vld [vmem:[%s223] sm:$0x1]
    %v226 = vperm.slane %v224, 0
    %v228 = vadd.f32 %v222, %v226
    %v229 = vtanh.pop %v228
    %s230 = scalar_lea.vmem [#allocation7], 64
    %v231 = vld [vmem:[%s230] sm:$0xff]
    %v232 = vld [vmem:[%s230 + $0x8] sm:$0xff]
    %v233 = vld [vmem:[%s230 + $0x10] sm:$0xff]
    %v234 = vld [vmem:[%s230 + $0x18] sm:$0xff]
    %s235 = scalar_lea.vmem %s5, 2
    %v236 = vld [vmem:[%s235] sm:$0x1]
    %v238 = vperm.slane %v236, 0
    %v241 = vsel %vm142, %v229, 0
    %243 = vmatpush.msra.mxu0 0.0
    %244 = vmatpush.msra.mxu0 0.0
    %245 = vmatpush.msra.mxu0 0.0
    %246 = vmatpush.msra.mxu0 0.0
    %247 = vmatpush.msra.mxu0 0.0
    %248 = vmatpush.msra.mxu0 0.0
    %249 = vmatpush.msra.mxu0 0.0
    %250 = vmatpush.msra.mxu0 0.0
    %251 = vmatpush.msra.mxu0 0.0
    %252 = vmatpush.msra.mxu0 0.0
    %253 = vmatpush.msra.mxu0 0.0
    %254 = vmatpush.msra.mxu0 0.0
    %255 = vmatpush.msra.mxu0 %v234
    %256 = vmatpush.msra.mxu0 %v233
    %257 = vmatpush.msra.mxu0 %v232
    %258 = vmatpush.msra.mxu0 %v231
    %259 = vmatmul.f32.gmra.mxu0 %v241
    %v260 = vpop.f32.mrf.mxu0
    %v261 = vadd.f32 %v238, %v260
    %262 = vdwg.mxu0
    %v263 = vtanh.pop %v261
    %s264 = scalar_lea.vmem [#allocation7], 96
    %v265 = vld [vmem:[%s264] sm:$0xff]
    %v266 = vld [vmem:[%s264 + $0x8] sm:$0xff]
    %v267 = vld [vmem:[%s264 + $0x10] sm:$0xff]
    %v268 = vld [vmem:[%s264 + $0x18] sm:$0xff]
    %s269 = scalar_lea.vmem %s5, 3
    %v270 = vld [vmem:[%s269] sm:$0x1]
    %v272 = vperm.slane %v270, 0
    %v275 = vsel %vm142, %v263, 0
    %277 = vmatpush.msra.mxu0 0.0
    %278 = vmatpush.msra.mxu0 0.0
    %279 = vmatpush.msra.mxu0 0.0
    %280 = vmatpush.msra.mxu0 0.0
    %281 = vmatpush.msra.mxu0 0.0
    %282 = vmatpush.msra.mxu0 0.0
    %283 = vmatpush.msra.mxu0 0.0
    %284 = vmatpush.msra.mxu0 0.0
    %285 = vmatpush.msra.mxu0 0.0
    %286 = vmatpush.msra.mxu0 0.0
    %287 = vmatpush.msra.mxu0 0.0
    %288 = vmatpush.msra.mxu0 0.0
    %289 = vmatpush.msra.mxu0 %v268
    %290 = vmatpush.msra.mxu0 %v267
    %291 = vmatpush.msra.mxu0 %v266
    %292 = vmatpush.msra.mxu0 %v265
    %293 = vmatmul.f32.gmra.mxu0 %v275
    %v294 = vpop.f32.mrf.mxu0
    %v295 = vadd.f32 %v272, %v294
    %296 = vdwg.mxu0
    %v297 = vtanh.pop %v295
    %s298 = scalar_lea.vmem [#allocation8], 1
    %v299 = vld [vmem:[%s298] sm:$0x1]
    %v301 = vperm.slane %v299, 0
    %v303 = vmul.f32 %v297, %v301
    %v304 = vsel %vm142, %v303, 0.0
    %305 = vadd.xlane.f32.xlu0 %v304
    %v306 = vpop.xlane.xlu0 %305
    %s307 = scalar_lea.vmem %s6, 1
    %v308 = vld [vmem:[%s307] sm:$0x1]
    %v310 = vperm.slane %v308, 0
    %v312 = vadd.f32 %v306, %v310
    %s313 = scalar_lea.vmem [#allocation5], 16
    %v314 = vld [vmem:[%s313] sm:$0xff]
    %316 = vset.pattern.permute.xlu0 0
    %317 = vperm.xlu0 %316, %v312
    %v318 = vpop.permute.xlu0 %317
    %v320 = vperm.slane %v314, 0
    %v321 = vmul.f32 %v318, %v320
    %s322 = scalar_lea.vmem [#allocation10], 2
    %v323 = vld [vmem:[%s322] sm:$0x1]
    %v325 = vperm.slane %v323, 0
    %v327 = vadd.f32 %v321, %v325
    %v328 = vtanh.pop %v327
    %s329 = scalar_lea.vmem [#allocation7], 128
    %v330 = vld [vmem:[%s329] sm:$0xff]
    %v331 = vld [vmem:[%s329 + $0x8] sm:$0xff]
    %v332 = vld [vmem:[%s329 + $0x10] sm:$0xff]
    %v333 = vld [vmem:[%s329 + $0x18] sm:$0xff]
    %s334 = scalar_lea.vmem %s5, 4
    %v335 = vld [vmem:[%s334] sm:$0x1]
    %v337 = vperm.slane %v335, 0
    %v340 = vsel %vm142, %v328, 0
    %342 = vmatpush.msra.mxu0 0.0
    %343 = vmatpush.msra.mxu0 0.0
    %344 = vmatpush.msra.mxu0 0.0
    %345 = vmatpush.msra.mxu0 0.0
    %346 = vmatpush.msra.mxu0 0.0
    %347 = vmatpush.msra.mxu0 0.0
    %348 = vmatpush.msra.mxu0 0.0
    %349 = vmatpush.msra.mxu0 0.0
    %350 = vmatpush.msra.mxu0 0.0
    %351 = vmatpush.msra.mxu0 0.0
    %352 = vmatpush.msra.mxu0 0.0
    %353 = vmatpush.msra.mxu0 0.0
    %354 = vmatpush.msra.mxu0 %v333
    %355 = vmatpush.msra.mxu0 %v332
    %356 = vmatpush.msra.mxu0 %v331
    %357 = vmatpush.msra.mxu0 %v330
    %358 = vmatmul.f32.gmra.mxu0 %v340
    %v359 = vpop.f32.mrf.mxu0
    %v360 = vadd.f32 %v337, %v359
    %361 = vdwg.mxu0
    %v362 = vtanh.pop %v360
    %s363 = scalar_lea.vmem [#allocation7], 160
    %v364 = vld [vmem:[%s363] sm:$0xff]
    %v365 = vld [vmem:[%s363 + $0x8] sm:$0xff]
    %v366 = vld [vmem:[%s363 + $0x10] sm:$0xff]
    %v367 = vld [vmem:[%s363 + $0x18] sm:$0xff]
    %s368 = scalar_lea.vmem %s5, 5
    %v369 = vld [vmem:[%s368] sm:$0x1]
    %v371 = vperm.slane %v369, 0
    %v374 = vsel %vm142, %v362, 0
    %376 = vmatpush.msra.mxu0 0.0
    %377 = vmatpush.msra.mxu0 0.0
    %378 = vmatpush.msra.mxu0 0.0
    %379 = vmatpush.msra.mxu0 0.0
    %380 = vmatpush.msra.mxu0 0.0
    %381 = vmatpush.msra.mxu0 0.0
    %382 = vmatpush.msra.mxu0 0.0
    %383 = vmatpush.msra.mxu0 0.0
    %384 = vmatpush.msra.mxu0 0.0
    %385 = vmatpush.msra.mxu0 0.0
    %386 = vmatpush.msra.mxu0 0.0
    %387 = vmatpush.msra.mxu0 0.0
    %388 = vmatpush.msra.mxu0 %v367
    %389 = vmatpush.msra.mxu0 %v366
    %390 = vmatpush.msra.mxu0 %v365
    %391 = vmatpush.msra.mxu0 %v364
    %392 = vmatmul.f32.gmra.mxu0 %v374
    %v393 = vpop.f32.mrf.mxu0
    %v394 = vadd.f32 %v371, %v393
    %395 = vdwg.mxu0
    %v396 = vtanh.pop %v394
    %s397 = scalar_lea.vmem [#allocation8], 2
    %v398 = vld [vmem:[%s397] sm:$0x1]
    %v400 = vperm.slane %v398, 0
    %v402 = vmul.f32 %v396, %v400
    %v403 = vsel %vm142, %v402, 0.0
    %404 = vadd.xlane.f32.xlu0 %v403
    %v405 = vpop.xlane.xlu0 %404
    %s406 = scalar_lea.vmem %s6, 2
    %v407 = vld [vmem:[%s406] sm:$0x1]
    %v409 = vperm.slane %v407, 0
    %v411 = vadd.f32 %v405, %v409
    %v412 = vlaneseq
    %v413 = vand.u32 %v412, 127
    %vm414 = vcmp.eq.s32.totalorder %v413, 0
    %v415 = vsel %vm414, %v219, 0.0
    %vm416 = vcmp.eq.s32.totalorder %v413, 1
    %v417 = vsel %vm416, %v318, %v415
    %vm418 = vcmp.eq.s32.totalorder %v413, 2
    %420 = vset.pattern.permute.xlu0 0
    %421 = vperm.xlu0 %420, %v411
    %v422 = vpop.permute.xlu0 %421
    %v424 = vsel %vm418, %v422, %v417
    %425 = vst [vmem:[#allocation11] sm:$0xff] %v424
    // Predicated region
    $region50: #{tpu_custom_call.1} parent=1 // pred_check
      _
    $region51: #{tpu_custom_call.1} parent=1 // pred_check_branch
      %427 = sbr.rel (0) target = $region53
    $region52: #{tpu_custom_call.1} parent=1 // pred_region
      %429 = vsyncadd [#allocation4], 0
      %s431 = sshll.u32 [#allocation11], 4
      %s432 = int_to_ptr.vmem [resolvable:$true] %s431
      %s433 = sshll.u32 %s7, 4
      %s434 = int_to_ptr.hbm [resolvable:$true] %s433
      %436 = dma.vmem_to_hbm [thread:$0]  %s432, 128, %s434, [#allocation4]
    $region53: #{tpu_custom_call.1} parent=1 // pred_fallthru
      _
    // Predicated region
    $region54: #{tpu_custom_call.1} parent=1 // pred_check
      _
    $region55: #{tpu_custom_call.1} parent=1 // pred_check_branch
      %438 = sbr.rel (0) target = $region57
    $region56: #{tpu_custom_call.1} parent=1 // pred_region
      %440 = dma.done [#allocation4], 128
    $region57: #{tpu_custom_call.1} parent=1 // pred_fallthru
      _
    %441 = vsyncpa [#allocation3], 1
    %442 = vsyncpa [#allocation6], 1
    %443 = vsyncpa [#allocation9], 1
    %444 = vsyncpa [#allocation4], 1

</llo_original>
